<compile_context>
chip_gen: v7x
topology: tpu7x:2x2x1
jax: 0.10.0
libtpu: 0.0.40
codegen_flags: <defaults>
</compile_context>

<pallas_src>
import jax
import jax.numpy as jnp
from jax.experimental import pallas as pl
from jax.experimental.pallas import tpu as pltpu


def _sublane_granularity(dtype):
    """Native sublane multiple: 8 for 4-byte, 16 for 2-byte, 32 for 1-byte."""
    itemsize = jnp.dtype(dtype).itemsize
    return max(8, 32 // max(itemsize, 1))


def _vmem_plan():
    """Return (budget_bytes for the 4 double-buffered x/out tiles, vmem_limit).

    Budget covers 2 input + 2 output buffers.  The limit leaves headroom for
    the small weight buffers and compiler-internal scratch, and stays well
    under physical VMEM (64 MiB/TC on v7x, 128 MiB on v5e/v6e).
    """
    cap = None
    try:
        info = pltpu.get_tpu_info()
        cap = getattr(info, "vmem_capacity_bytes", None)
    except Exception:
        cap = None
    if not cap:
        # Conservative fallback: 4 x 1.5 MiB tiles fit the default scoped-VMEM
        # limit on every generation (v5e's 16 MiB is the tightest).
        return 6 * 1024 * 1024, None
    budget = int(min(cap // 3, 24 * 1024 * 1024))
    limit = int(min(budget + 16 * 1024 * 1024, cap - 8 * 1024 * 1024))
    return budget, max(limit, budget)


def _choose_tiles(R, T, dtype, budget_bytes):
    """Pick (R_tile, T_tile) for a (R, T) elementwise scaling.

    Prefers full-extent dims (no padding, no (8,128) constraint); otherwise
    dtype-aware sublane multiples for rows and >=128-lane multiples for T so
    stores are unmasked full-lane vst and DMA bursts stay large.
    """
    itemsize = jnp.dtype(dtype).itemsize
    sub = _sublane_granularity(dtype)
    # 2 input + 2 output double-buffered tiles share the budget.
    per_block = max(budget_bytes // 4, sub * 128 * itemsize)

    # Whole tensor fits in a single block.
    if R * T * itemsize <= per_block:
        return R, T

    # T: full extent if even a minimal row group fits (contiguous row blocks),
    # else the largest lane-dense multiple of 128 inside the per-block budget.
    if sub * T * itemsize <= per_block:
        T_tile = T
    else:
        T_tile = max(128, (per_block // (sub * itemsize)) // 128 * 128)

    # Rows: full extent if they fit, else the largest sublane multiple.
    max_rows = max(sub, per_block // (T_tile * itemsize))
    if R <= max_rows:
        R_tile = R
    else:
        R_tile = max(sub, (max_rows // sub) * sub)
    return R_tile, T_tile


def _weighting_kernel(x_ref, w_ref, o_ref):
    # x_ref / o_ref: (R_tile, T_tile); w_ref: (R_tile, 1) per-row scale.
    # The (R_tile, 1) column is splatted across lanes here (VPU/XLU slots are
    # idle in this DMA-bound kernel) instead of pre-broadcasting through HBM.
    o_ref[...] = x_ref[...] * w_ref[...]


def weighting_layer(x, weight):
    """Pallas equivalent of WeightingLayer.forward.

    x:      (B, F, T)
    weight: (F, 1)
    returns (B, F, T), out[b, f, t] = x[b, f, t] * weight[f, 0]
    """
    B, F, T = x.shape
    assert weight.shape == (F, 1)
    dtype = x.dtype
    itemsize = jnp.dtype(dtype).itemsize
    R = B * F

    budget, vmem_limit = _vmem_plan()
    R_tile, T_tile = _choose_tiles(R, T, dtype, budget)

    # Free (metadata-only) row-major reshape: blocks are contiguous HBM slabs
    # of whole rows whenever T_tile == T.
    x2 = x.reshape(R, T)
    # Per-row weight column: only B*F elements of extra traffic (negligible
    # vs. the 2*B*F*T main stream).
    w2 = jnp.broadcast_to(
        weight.astype(dtype)[None, :, :], (B, F, 1)
    ).reshape(R, 1)

    grid = (pl.cdiv(R, R_tile), pl.cdiv(T, T_tile))

    out2 = pl.pallas_call(
        _weighting_kernel,
        out_shape=jax.ShapeDtypeStruct((R, T), dtype),
        grid_spec=pltpu.PrefetchScalarGridSpec(
            num_scalar_prefetch=0,
            grid=grid,
            in_specs=[
                pl.BlockSpec((R_tile, T_tile), lambda ri, ti: (ri, ti)),
                # Block index is constant across the inner T sweep, so the
                # tiny weight column is not re-fetched per step.
                pl.BlockSpec((R_tile, 1), lambda ri, ti: (ri, 0)),
            ],
            out_specs=pl.BlockSpec((R_tile, T_tile), lambda ri, ti: (ri, ti)),
        ),
        compiler_params=pltpu.CompilerParams(
            # Every grid axis is independent; leading (row) axis gives v7x's
            # two TensorCores contiguous halves of the tensor.
            dimension_semantics=("parallel", "parallel"),
            vmem_limit_bytes=vmem_limit,
        ),
        cost_estimate=pl.CostEstimate(
            flops=R * T,
            transcendentals=0,
            bytes_accessed=(2 * R * T + R) * itemsize,
        ),
    )(x2, w2)

    return out2.reshape(B, F, T)


if __name__ == "__main__":
    key = jax.random.PRNGKey(0)
    B, F, T = 2, 4, 16

    kx, _ = jax.random.split(key)
    x = jax.random.normal(kx, (B, F, T), dtype=jnp.float32)
    # Module __init__ uses ones((num_features, 1)); perturb deterministically
    # so the per-feature scaling is actually exercised.
    weight = jnp.ones((F, 1), dtype=jnp.float32) + 0.1 * jnp.arange(
        F, dtype=jnp.float32
    ).reshape(F, 1)

    out = jax.block_until_ready(weighting_layer(x, weight))

    # reference: einsum('bft,fi->bfit', X, W).squeeze(-2)
    ref = jnp.einsum("bft,fi->bfit", x, weight)[:, :, 0, :]
    assert out.shape == (B, F, T)
    assert jnp.allclose(out, ref, atol=1e-6, rtol=1e-6)

    print("KERNEL_OK")
</pallas_src>

<mosaic_0001>
module attributes {stable_mosaic.version = 11 : i64} {
  func.func @_weighting_kernel(%arg0: i32, %arg1: i32, %arg2: memref<8x16xf32, #tpu.memory_space<vmem>>, %arg3: memref<8x1xf32, #tpu.memory_space<vmem>>, %arg4: memref<8x16xf32, #tpu.memory_space<vmem>>) attributes {dimension_semantics = [#tpu.dimension_semantics<parallel>, #tpu.dimension_semantics<parallel>], iteration_bounds = array<i64: 1, 1>, scalar_prefetch = 0 : i64, scratch_operands = 0 : i64, tpu.core_type = #tpu.core_type<tc>, window_params = [{transform_indices = @transform_0, window_bounds = array<i64: 8, 16>}, {transform_indices = @transform_1, window_bounds = array<i64: 8, 1>}, {transform_indices = @transform_2, window_bounds = array<i64: 8, 16>}]} {
    %c0 = arith.constant 0 : index
    %c0_0 = arith.constant 0 : index
    %0 = vector.load %arg2[%c0, %c0_0] : memref<8x16xf32, #tpu.memory_space<vmem>>, vector<8x16xf32>
    %c0_1 = arith.constant 0 : index
    %c0_2 = arith.constant 0 : index
    %1 = vector.load %arg3[%c0_1, %c0_2] : memref<8x1xf32, #tpu.memory_space<vmem>>, vector<8x1xf32>
    %2 = vector.broadcast %1 : vector<8x1xf32> to vector<8x16xf32>
    %3 = arith.mulf %0, %2 : vector<8x16xf32>
    %c0_3 = arith.constant 0 : index
    %c0_4 = arith.constant 0 : index
    %4 = vector.load %arg4[%c0_3, %c0_4] : memref<8x16xf32, #tpu.memory_space<vmem>>, vector<8x16xf32>
    tpu.vector_store %arg4[%c0_3, %c0_4], %3 {strides = array<i32>} : memref<8x16xf32, #tpu.memory_space<vmem>>, vector<8x16xf32>,
    return
  }
  func.func @transform_0(%arg0: i32, %arg1: i32) -> (i32, i32) {
    %c0_i32 = arith.constant 0 : i32
    return %arg0, %arg1 : i32, i32
  }
  func.func @transform_1(%arg0: i32, %arg1: i32) -> (i32, i32) {
    %c0_i32 = arith.constant 0 : i32
    %c0_i32_0 = arith.constant 0 : i32
    return %arg0, %c0_i32 : i32, i32
  }
  func.func @transform_2(%arg0: i32, %arg1: i32) -> (i32, i32) {
    %c0_i32 = arith.constant 0 : i32
    return %arg0, %arg1 : i32, i32
  }
}

</mosaic_0001>

<llo_original>
// kernel: tpu_custom_call.1
$region0: #{tpu_custom_call.1}
  #allocation0 [shape = 'u32[]', space=smem, size = 0x4, offset = 0x4, fixed_abs, tag = 'smem constant byte address 0x4 - core index']
  #allocation1 [shape = 'u32[144,128]{1,0:T(1,128)}', space=vmem, size = 0x12000, scoped, tag = 'internal scratch']
  %s0 = inlined_call_operand.vmem [shape: f32[8,16], index: 0, kind: input, shape index: {}]
  %s1 = inlined_call_operand.vmem [shape: f32[8,1], index: 1, kind: input, shape index: {}]
  %s2 = inlined_call_operand.hbm [shape: f32[8,16], index: 2, kind: output, shape index: {}]
  %s3 = sld [smem:[#allocation0]]
  $region18: #{tpu_custom_call.1} parent=0
    _
  %s5 = ssub.s32 1, %s3
  %s6 = scalar_select 0, %s5, %s3
  $region1: #{tpu_custom_call.1} parent=0
    #allocation2 [shape = 'u8[4096]{0}', space=vmem, size = 0x1000, scoped, tag = 'output window, operand 0, single buffered']
    #allocation3 [shape = 's32[1]{0}', space=sflag, size = 0x4, scoped, tag = 'scoped memory for tpu_custom_call.1']
    %7 = vsyncpa [#allocation3], 0
    // Predicated region
    $region2: #{tpu_custom_call.1} parent=1 // pred_check
      _
    $region3: #{tpu_custom_call.1} parent=1 // pred_check_branch
      %9 = sbr.rel (0) target = $region5
    $region4: #{tpu_custom_call.1} parent=1 // pred_region
      _
    $region5: #{tpu_custom_call.1} parent=1 // pred_fallthru
      _
    // Predicated region
    $region6: #{tpu_custom_call.1} parent=1 // pred_check
      _
    $region7: #{tpu_custom_call.1} parent=1 // pred_check_branch
      %11 = sbr.rel (0) target = $region9
    $region8: #{tpu_custom_call.1} parent=1 // pred_region
      _
    $region9: #{tpu_custom_call.1} parent=1 // pred_fallthru
      _
    %v12 = vld [vmem:[%s0] sm:$0xff]
    %v13 = vld [vmem:[%s1] sm:$0xff]
    %15 = vset.pattern.permute.xlu0 0
    %16 = vperm.xlu0 %15, %v13
    %v17 = vpop.permute.xlu0 %16
    %v19 = vmul.f32 %v12, %v17
    %vm20 = vcmask 130048
    %21 = vst.msk [vmem:[#allocation2] sm:$0xff] %vm20, %v19
    // Predicated region
    $region10: #{tpu_custom_call.1} parent=1 // pred_check
      _
    $region11: #{tpu_custom_call.1} parent=1 // pred_check_branch
      %23 = sbr.rel (0) target = $region13
    $region12: #{tpu_custom_call.1} parent=1 // pred_region
      %s25 = ssub.s32 128, 128
      %26 = vsyncadd [#allocation3], %s25
      %s28 = sshll.u32 [#allocation2], 4
      %s29 = int_to_ptr.vmem [resolvable:$true] %s28
      %31 = dma.vmem_to_hbm [thread:$0]  %s29, 128, %s2, [#allocation3]
    $region13: #{tpu_custom_call.1} parent=1 // pred_fallthru
      _
    // Predicated region
    $region14: #{tpu_custom_call.1} parent=1 // pred_check
      _
    $region15: #{tpu_custom_call.1} parent=1 // pred_check_branch
      %33 = sbr.rel (0) target = $region17
    $region16: #{tpu_custom_call.1} parent=1 // pred_region
      %34 = dma.done [#allocation3], 128
    $region17: #{tpu_custom_call.1} parent=1 // pred_fallthru
      _
    %35 = vsyncpa [#allocation3], 1

</llo_original>
